<compile_context>
chip_gen: v7x
topology: tpu7x:2x2x1
jax: 0.10.0
libtpu: 0.0.40
codegen_flags: <defaults>
</compile_context>

<pallas_src>
import functools

import jax
import jax.numpy as jnp
from jax.experimental import pallas as pl
from jax.experimental.pallas import tpu as pltpu

_EPS = 1e-6                    # matches F.pairwise_distance default
_LANES = 128
_SUBLANES = 8


def _round_up(x, m):
    return (x + m - 1) // m * m


def _vmem_capacity_bytes():
    """Physical VMEM of the current chip; conservative 64 MiB fallback."""
    try:
        cap = getattr(pltpu.get_tpu_info(), "vmem_capacity_bytes", None)
        if cap:
            return int(cap)
    except Exception:
        pass
    return 64 * 1024 * 1024


def _triplet_kernel(a_ref, p_ref, n_ref, o_ref, *acc_refs, margin, d_total,
                    tile_b, tile_d, batch_b, split_d):
    """One (batch-tile, feature-tile) grid step.

    Writes a lane-dense (8, 128) block whose [0, 0] element is the partial sum
    of relu(pos_dist - neg_dist + margin) over this tile's valid rows.
    """
    bi = pl.program_id(0)

    def sq_dists(rvec):
        # Elementwise diff/square on the VPU; feature reduction on the MXU
        # (free slot).  f32 operands + HIGHEST precision keep the
        # sum-of-squares at full f32 accuracy.
        a = a_ref[...].astype(jnp.float32)
        dp = a - p_ref[...].astype(jnp.float32) + _EPS
        pos = jnp.dot(dp * dp, rvec, preferred_element_type=jnp.float32,
                      precision=jax.lax.Precision.HIGHEST)
        dn = a - n_ref[...].astype(jnp.float32) + _EPS
        neg = jnp.dot(dn * dn, rvec, preferred_element_type=jnp.float32,
                      precision=jax.lax.Precision.HIGHEST)
        return pos, neg                                        # (tile_b, 1) each

    def finalize(pos_sq, neg_sq):
        hinge = jnp.maximum(jnp.sqrt(pos_sq) - jnp.sqrt(neg_sq) + margin, 0.0)
        # Mask rows past the logical batch (ragged last tile reads garbage).
        row = bi * tile_b + jax.lax.broadcasted_iota(jnp.int32, (tile_b, 1), 0)
        hinge = jnp.where(row < batch_b, hinge, 0.0)
        partial = jnp.sum(hinge, axis=0, keepdims=True)        # (1, 1)
        ri = jax.lax.broadcasted_iota(jnp.int32, o_ref.shape, 0)
        ci = jax.lax.broadcasted_iota(jnp.int32, o_ref.shape, 1)
        # Full, unmasked (8, 128) store; only [0, 0] carries the partial sum.
        o_ref[...] = jnp.where((ri == 0) & (ci == 0), partial, 0.0)

    if not split_d:
        # Common case: the whole feature dim fits in one tile.
        pos_sq, neg_sq = sq_dists(jnp.ones((tile_d, 1), jnp.float32))
        finalize(pos_sq, neg_sq)
    else:
        # Huge-D guard: accumulate partial sums of squares across D tiles.
        pos_acc, neg_acc = acc_refs
        di = pl.program_id(1)
        nd = pl.num_programs(1)

        @pl.when(di == 0)
        def _():
            pos_acc[...] = jnp.zeros_like(pos_acc)
            neg_acc[...] = jnp.zeros_like(neg_acc)

        # Fold the ragged-tail column mask into the MXU reduction operand.
        col = di * tile_d + jax.lax.broadcasted_iota(jnp.int32, (tile_d, 1), 0)
        rvec = (col < d_total).astype(jnp.float32)
        pos_sq, neg_sq = sq_dists(rvec)
        pos_acc[...] += pos_sq
        neg_acc[...] += neg_sq

        @pl.when(di == nd - 1)
        def _():
            finalize(pos_acc[...], neg_acc[...])


def triplet_loss(anchor, positive, negative, margin=1.0):
    """Pallas TPU TripletLoss.forward; returns a scalar f32.

    Accepts f32 or bf16 (any float) inputs; bf16 halves the dominant HBM-read
    traffic and the kernel upcasts to f32 per tile for the distance math.
    """
    B, D = anchor.shape
    assert positive.shape == (B, D) and negative.shape == (B, D)
    itemsize = jnp.dtype(anchor.dtype).itemsize

    capacity = _vmem_capacity_bytes()
    # ~half of physical VMEM for double-buffered inputs + f32 temporaries:
    # v5e/v6e (128 MiB) -> 56 MiB budget; v7x (64 MiB / TC) -> 24 MiB.
    budget = max(min(capacity // 2 - (8 << 20), 56 << 20), 8 << 20)

    def rows_for(td, with_acc):
        # 3 inputs x 2 pipeline buffers + ~8 f32 full-tile temporaries
        # (+ lane-padded (tile_b, 1) accumulators when the D axis is split).
        per_row = 6 * td * itemsize + 8 * td * 4 + (2 * _LANES * 4 if with_acc else 0)
        return budget // per_row

    # Split the feature axis only if even 8 rows at full D overflow the budget.
    if rows_for(D, False) >= _SUBLANES:
        tile_d, num_d, split_d = D, 1, False
    else:
        tile_d = max(_LANES,
                     (budget // (_SUBLANES * (6 * itemsize + 32))) // _LANES * _LANES)
        tile_d = min(tile_d, _round_up(D, _LANES))
        num_d, split_d = pl.cdiv(D, tile_d), True

    tile_b = rows_for(tile_d, split_d)
    tile_b = max(_SUBLANES, tile_b // _SUBLANES * _SUBLANES)
    tile_b = min(tile_b, _round_up(B, _SUBLANES))
    num_b = pl.cdiv(B, tile_b)

    vmem_limit = min(budget + budget // 2 + (8 << 20), capacity - (8 << 20))
    vmem_limit = max(int(vmem_limit), 32 << 20)

    kernel = functools.partial(
        _triplet_kernel, margin=float(margin), d_total=D, tile_b=tile_b,
        tile_d=tile_d, batch_b=B, split_d=split_d)

    in_spec = pl.BlockSpec((tile_b, tile_d), lambda bi, di: (bi, di))
    out_spec = pl.BlockSpec((_SUBLANES, _LANES), lambda bi, di: (bi, 0))
    scratch = ([pltpu.VMEM((tile_b, 1), jnp.float32),
                pltpu.VMEM((tile_b, 1), jnp.float32)] if split_d else [])

    partial_sums = pl.pallas_call(
        kernel,
        out_shape=jax.ShapeDtypeStruct((num_b * _SUBLANES, _LANES), jnp.float32),
        grid_spec=pltpu.PrefetchScalarGridSpec(
            num_scalar_prefetch=0,
            grid=(num_b, num_d),
            in_specs=[in_spec, in_spec, in_spec],
            out_specs=out_spec,
            scratch_shapes=scratch,
        ),
        compiler_params=pltpu.CompilerParams(
            dimension_semantics=("parallel", "arbitrary"),
            vmem_limit_bytes=int(vmem_limit),
        ),
    )(anchor, positive, negative)

    # Tiny epilogue: one partial sum per batch tile -> mean.
    return jnp.sum(partial_sums) / jnp.float32(B)


def _reference(anchor, positive, negative, margin=1.0):
    a = anchor.astype(jnp.float32)
    p = positive.astype(jnp.float32)
    n = negative.astype(jnp.float32)
    pd = jnp.sqrt(jnp.sum((a - p + _EPS) ** 2, axis=1))
    nd = jnp.sqrt(jnp.sum((a - n + _EPS) ** 2, axis=1))
    return jnp.mean(jnp.maximum(pd - nd + margin, 0.0))


if __name__ == "__main__":
    key = jax.random.PRNGKey(0)

    # Case 1: f32, tile-aligned batch (jitted call path).
    k1, k2, k3, k4, k5, k6 = jax.random.split(key, 6)
    B, D = 16, 32
    anchor = jax.random.normal(k1, (B, D), dtype=jnp.float32)
    positive = jax.random.normal(k2, (B, D), dtype=jnp.float32)
    negative = jax.random.normal(k3, (B, D), dtype=jnp.float32)

    loss_fn = jax.jit(functools.partial(triplet_loss, margin=1.0))
    loss = jax.block_until_ready(loss_fn(anchor, positive, negative))
    ref = _reference(anchor, positive, negative, margin=1.0)
    assert jnp.allclose(loss, ref, rtol=1e-4, atol=1e-4), (loss, ref)

    # Case 2: bf16 inputs, ragged batch (exercises row masking + upcast path).
    B2, D2 = 50, 96
    a2 = jax.random.normal(k4, (B2, D2), dtype=jnp.bfloat16)
    p2 = jax.random.normal(k5, (B2, D2), dtype=jnp.bfloat16)
    n2 = jax.random.normal(k6, (B2, D2), dtype=jnp.bfloat16)

    loss2 = jax.block_until_ready(triplet_loss(a2, p2, n2, margin=1.0))
    ref2 = _reference(a2, p2, n2, margin=1.0)
    assert jnp.allclose(loss2, ref2, rtol=1e-4, atol=1e-4), (loss2, ref2)

    print("KERNEL_OK")
</pallas_src>

<mosaic_0001>
module attributes {stable_mosaic.version = 11 : i64} {
  func.func @_triplet_kernel(%arg0: i32, %arg1: i32, %arg2: memref<16x32xf32, #tpu.memory_space<vmem>>, %arg3: memref<16x32xf32, #tpu.memory_space<vmem>>, %arg4: memref<16x32xf32, #tpu.memory_space<vmem>>, %arg5: memref<8x128xf32, #tpu.memory_space<vmem>>) attributes {dimension_semantics = [#tpu.dimension_semantics<parallel>, #tpu.dimension_semantics<arbitrary>], iteration_bounds = array<i64: 1, 1>, scalar_prefetch = 0 : i64, scratch_operands = 0 : i64, tpu.core_type = #tpu.core_type<tc>, window_params = [{transform_indices = @transform_0, window_bounds = array<i64: 16, 32>}, {transform_indices = @transform_1, window_bounds = array<i64: 16, 32>}, {transform_indices = @transform_2, window_bounds = array<i64: 16, 32>}, {transform_indices = @transform_3, window_bounds = array<i64: 8, 128>}]} {
    %cst = arith.constant 1.000000e+00 : f32
    %0 = vector.broadcast %cst : f32 to vector<32x1xf32>
    %c0 = arith.constant 0 : index
    %c0_0 = arith.constant 0 : index
    %1 = vector.load %arg2[%c0, %c0_0] : memref<16x32xf32, #tpu.memory_space<vmem>>, vector<16x32xf32>
    %c0_1 = arith.constant 0 : index
    %c0_2 = arith.constant 0 : index
    %2 = vector.load %arg3[%c0_1, %c0_2] : memref<16x32xf32, #tpu.memory_space<vmem>>, vector<16x32xf32>
    %3 = arith.subf %1, %2 : vector<16x32xf32>
    %cst_3 = arith.constant 9.99999997E-7 : f32
    %4 = vector.broadcast %cst_3 : f32 to vector<16x32xf32>
    %5 = arith.addf %3, %4 : vector<16x32xf32>
    %6 = arith.mulf %5, %5 : vector<16x32xf32>
    %cst_4 = arith.constant dense<0.000000e+00> : vector<16x1xf32>
    %7 = tpu.matmul %6, %0, %cst_4 {dimension_numbers = #tpu.dot_dimension_numbers<[1], [0], [0], [1], [0, 0, 1, 1], [], []>, precision = #tpu.contract_precision<fp32>} : vector<16x32xf32>, vector<32x1xf32>, vector<16x1xf32> -> vector<16x1xf32>
    %c0_5 = arith.constant 0 : index
    %c0_6 = arith.constant 0 : index
    %8 = vector.load %arg4[%c0_5, %c0_6] : memref<16x32xf32, #tpu.memory_space<vmem>>, vector<16x32xf32>
    %9 = arith.subf %1, %8 : vector<16x32xf32>
    %cst_7 = arith.constant 9.99999997E-7 : f32
    %10 = vector.broadcast %cst_7 : f32 to vector<16x32xf32>
    %11 = arith.addf %9, %10 : vector<16x32xf32>
    %12 = arith.mulf %11, %11 : vector<16x32xf32>
    %cst_8 = arith.constant dense<0.000000e+00> : vector<16x1xf32>
    %13 = tpu.matmul %12, %0, %cst_8 {dimension_numbers = #tpu.dot_dimension_numbers<[1], [0], [0], [1], [0, 0, 1, 1], [], []>, precision = #tpu.contract_precision<fp32>} : vector<16x32xf32>, vector<32x1xf32>, vector<16x1xf32> -> vector<16x1xf32>
    %14 = math.sqrt %7 : vector<16x1xf32>
    %15 = math.sqrt %13 : vector<16x1xf32>
    %16 = arith.subf %14, %15 : vector<16x1xf32>
    %cst_9 = arith.constant 1.000000e+00 : f32
    %17 = vector.broadcast %cst_9 : f32 to vector<16x1xf32>
    %18 = arith.addf %16, %17 : vector<16x1xf32>
    %cst_10 = arith.constant 0.000000e+00 : f32
    %19 = vector.broadcast %cst_10 : f32 to vector<16x1xf32>
    %20 = arith.maximumf %18, %19 : vector<16x1xf32>
    %c16_i32 = arith.constant 16 : i32
    %21 = arith.muli %arg0, %c16_i32 : i32
    %22 = tpu.iota {dimensions = array<i32: 0>} : vector<16x1xi32>
    %23 = vector.broadcast %21 : i32 to vector<16x1xi32>
    %24 = arith.addi %23, %22 : vector<16x1xi32>
    %c16_i32_11 = arith.constant 16 : i32
    %25 = vector.broadcast %c16_i32_11 : i32 to vector<16x1xi32>
    %26 = arith.cmpi slt, %24, %25 : vector<16x1xi32>
    %cst_12 = arith.constant 0.000000e+00 : f32
    %27 = vector.broadcast %cst_12 : f32 to vector<16x1xf32>
    %28 = arith.select %26, %20, %27 : vector<16x1xi1>, vector<16x1xf32>
    %cst_13 = arith.constant dense<0.000000e+00> : vector<1xf32>
    %29 = vector.multi_reduction <add>, %28, %cst_13 [0] : vector<16x1xf32> to vector<1xf32>
    %30 = vector.shape_cast %29 : vector<1xf32> to vector<1x1xf32>
    %31 = tpu.iota {dimensions = array<i32: 0>} : vector<8x128xi32>
    %32 = tpu.iota {dimensions = array<i32: 1>} : vector<8x128xi32>
    %c0_i32 = arith.constant 0 : i32
    %33 = vector.broadcast %c0_i32 : i32 to vector<8x128xi32>
    %34 = arith.cmpi eq, %31, %33 : vector<8x128xi32>
    %c0_i32_14 = arith.constant 0 : i32
    %35 = vector.broadcast %c0_i32_14 : i32 to vector<8x128xi32>
    %36 = arith.cmpi eq, %32, %35 : vector<8x128xi32>
    %37 = arith.andi %34, %36 : vector<8x128xi1>
    %cst_15 = arith.constant 0.000000e+00 : f32
    %38 = vector.shape_cast %30 : vector<1x1xf32> to vector<1x1xf32>
    %39 = vector.broadcast %38 : vector<1x1xf32> to vector<8x128xf32>
    %40 = vector.broadcast %cst_15 : f32 to vector<8x128xf32>
    %41 = arith.select %37, %39, %40 : vector<8x128xi1>, vector<8x128xf32>
    %c0_16 = arith.constant 0 : index
    %c0_17 = arith.constant 0 : index
    %42 = vector.load %arg5[%c0_16, %c0_17] : memref<8x128xf32, #tpu.memory_space<vmem>>, vector<8x128xf32>
    tpu.vector_store %arg5[%c0_16, %c0_17], %41 {strides = array<i32>} : memref<8x128xf32, #tpu.memory_space<vmem>>, vector<8x128xf32>,
    return
  }
  func.func @transform_0(%arg0: i32, %arg1: i32) -> (i32, i32) {
    %c0_i32 = arith.constant 0 : i32
    return %arg0, %arg1 : i32, i32
  }
  func.func @transform_1(%arg0: i32, %arg1: i32) -> (i32, i32) {
    %c0_i32 = arith.constant 0 : i32
    return %arg0, %arg1 : i32, i32
  }
  func.func @transform_2(%arg0: i32, %arg1: i32) -> (i32, i32) {
    %c0_i32 = arith.constant 0 : i32
    return %arg0, %arg1 : i32, i32
  }
  func.func @transform_3(%arg0: i32, %arg1: i32) -> (i32, i32) {
    %c0_i32 = arith.constant 0 : i32
    %c0_i32_0 = arith.constant 0 : i32
    return %arg0, %c0_i32 : i32, i32
  }
}

</mosaic_0001>

<llo_original>
// kernel: triplet_loss.1
$region0: #{triplet_loss.1}
  #allocation0 [shape = 'u32[]', space=smem, size = 0x4, offset = 0x4, fixed_abs, tag = 'smem constant byte address 0x4 - core index']
  #allocation1 [shape = 'u32[144,128]{1,0:T(1,128)}', space=vmem, size = 0x12000, scoped, tag = 'internal scratch']
  %s0 = inlined_call_operand.hbm [shape: f32[16,32], index: 0, kind: input, shape index: {}]
  %s1 = inlined_call_operand.hbm [shape: f32[16,32], index: 1, kind: input, shape index: {}]
  %s2 = inlined_call_operand.hbm [shape: f32[16,32], index: 2, kind: input, shape index: {}]
  %s3 = inlined_call_operand.vmem [shape: f32[8,128], index: 3, kind: output, shape index: {}]
  %s4 = sld [smem:[#allocation0]]
  $region34: #{triplet_loss.1} parent=0
    _
  %s6 = ssub.s32 1, %s4
  %s7 = scalar_select 0, %s6, %s4
  $region1: #{triplet_loss.1} parent=0
    #allocation2 [shape = 'u8[8192]{0}', space=vmem, size = 0x2000, scoped, tag = 'input window, operand 0, single buffered']
    #allocation3 [shape = 's32[1]{0}', space=sflag, size = 0x4, scoped, tag = 'scoped memory for triplet_loss.1']
    #allocation4 [shape = 'u8[8192]{0}', space=vmem, size = 0x2000, scoped, tag = 'input window, operand 1, single buffered']
    #allocation5 [shape = 's32[1]{0}', space=sflag, size = 0x4, scoped, tag = 'scoped memory for triplet_loss.1']
    #allocation6 [shape = 'u8[8192]{0}', space=vmem, size = 0x2000, scoped, tag = 'input window, operand 2, single buffered']
    %8 = vsyncpa [#allocation3], 0
    %9 = vsyncpa [#allocation5], 0
    // Predicated region
    $region2: #{triplet_loss.1} parent=1 // pred_check
      _
    $region3: #{triplet_loss.1} parent=1 // pred_check_branch
      %11 = sbr.rel (0) target = $region5
    $region4: #{triplet_loss.1} parent=1 // pred_region
      %s13 = ssub.s32 256, 256
      %14 = vsyncadd [#allocation3], %s13
      %s15 = sshll.u32 [#allocation2], 4
      %s16 = int_to_ptr.vmem [resolvable:$true] %s15
      %21 = dma.hbm_to_vmem [thread:$0]  %s0, 256, %s16, [#allocation3], 128, 128, 8
    $region5: #{triplet_loss.1} parent=1 // pred_fallthru
      _
    // Predicated region
    $region6: #{triplet_loss.1} parent=1 // pred_check
      _
    $region7: #{triplet_loss.1} parent=1 // pred_check_branch
      %23 = sbr.rel (0) target = $region9
    $region8: #{triplet_loss.1} parent=1 // pred_region
      %s25 = ssub.s32 256, 256
      %26 = vsyncadd [#allocation5], %s25
      %s27 = sshll.u32 [#allocation4], 4
      %s28 = int_to_ptr.vmem [resolvable:$true] %s27
      %33 = dma.hbm_to_vmem [thread:$0]  %s1, 256, %s28, [#allocation5], 128, 128, 8
    $region9: #{triplet_loss.1} parent=1 // pred_fallthru
      _
    // Predicated region
    $region10: #{triplet_loss.1} parent=1 // pred_check
      _
    $region11: #{triplet_loss.1} parent=1 // pred_check_branch
      %35 = sbr.rel (0) target = $region13
    $region12: #{triplet_loss.1} parent=1 // pred_region
      %s37 = ssub.s32 256, 256
      %38 = vsyncadd [#allocation5], %s37
      %s39 = sshll.u32 [#allocation6], 4
      %s40 = int_to_ptr.vmem [resolvable:$true] %s39
      %45 = dma.hbm_to_vmem [thread:$0]  %s2, 256, %s40, [#allocation5], 128, 128, 8
    $region13: #{triplet_loss.1} parent=1 // pred_fallthru
      _
    // Predicated region
    $region14: #{triplet_loss.1} parent=1 // pred_check
      _
    $region15: #{triplet_loss.1} parent=1 // pred_check_branch
      %47 = sbr.rel (0) target = $region17
    $region16: #{triplet_loss.1} parent=1 // pred_region
      %48 = dma.done [#allocation3], 256
    $region17: #{triplet_loss.1} parent=1 // pred_fallthru
      _
    // Predicated region
    $region18: #{triplet_loss.1} parent=1 // pred_check
      _
    $region19: #{triplet_loss.1} parent=1 // pred_check_branch
      %50 = sbr.rel (0) target = $region21
    $region20: #{triplet_loss.1} parent=1 // pred_region
      %51 = dma.done [#allocation5], 256
    $region21: #{triplet_loss.1} parent=1 // pred_fallthru
      _
    // Predicated region
    $region22: #{triplet_loss.1} parent=1 // pred_check
      _
    $region23: #{triplet_loss.1} parent=1 // pred_check_branch
      %53 = sbr.rel (0) target = $region25
    $region24: #{triplet_loss.1} parent=1 // pred_region
      %54 = dma.done [#allocation5], 256
    $region25: #{triplet_loss.1} parent=1 // pred_fallthru
      _
    %v55 = vld [vmem:[#allocation2] sm:$0xff]
    %v56 = vld [vmem:[#allocation2 + $0x8] sm:$0xff]
    %v57 = vld [vmem:[#allocation4] sm:$0xff]
    %v58 = vld [vmem:[#allocation4 + $0x8] sm:$0xff]
    %v59 = vsub.f32 %v55, %v57
    %v60 = vsub.f32 %v56, %v58
    %v61 = vadd.f32 %v59, 1e-06
    %v62 = vadd.f32 %v60, 1e-06
    %v63 = vmul.f32 %v61, %v61
    %v64 = vmul.f32 %v62, %v62
    %vm65 = vcmask 261120
    %v67 = vsel %vm65, %v63, 0
    %v70 = vsel %vm65, %v64, 0
    %72 = vmatprep.subr.mxu0 0.0
    %73 = vmatpush1.msra.mxu0 1.0
    %74 = vmatprep.subr.mxu0 0.0
    %75 = vmatpush1.msra.mxu0 1.0
    %76 = vmatprep.subr.mxu0 0.0
    %77 = vmatpush1.msra.mxu0 1.0
    %78 = vmatprep.subr.mxu0 0.0
    %79 = vmatpush1.msra.mxu0 1.0
    %80 = vmatprep.subr.mxu0 0.0
    %81 = vmatpush1.msra.mxu0 0.0
    %82 = vmatprep.subr.mxu0 0.0
    %83 = vmatpush1.msra.mxu0 0.0
    %84 = vmatprep.subr.mxu0 0.0
    %85 = vmatpush1.msra.mxu0 0.0
    %86 = vmatprep.subr.mxu0 0.0
    %87 = vmatpush1.msra.mxu0 0.0
    %88 = vmatprep.subr.mxu0 0.0
    %89 = vmatpush1.msra.mxu0 0.0
    %90 = vmatprep.subr.mxu0 0.0
    %91 = vmatpush1.msra.mxu0 0.0
    %92 = vmatprep.subr.mxu0 0.0
    %93 = vmatpush1.msra.mxu0 0.0
    %94 = vmatprep.subr.mxu0 0.0
    %95 = vmatpush1.msra.mxu0 0.0
    %96 = vmatprep.subr.mxu0 0.0
    %97 = vmatpush1.msra.mxu0 0.0
    %98 = vmatprep.subr.mxu0 0.0
    %99 = vmatpush1.msra.mxu0 0.0
    %100 = vmatprep.subr.mxu0 0.0
    %101 = vmatpush1.msra.mxu0 0.0
    %102 = vmatprep.subr.mxu0 0.0
    %103 = vmatpush1.msra.mxu0 0.0
    %104 = vmatprep.subr.mxu0 0.0
    %105 = vmatpush1.msra.mxu0 0.0
    %106 = vmatprep.subr.mxu0 0.0
    %107 = vmatpush1.msra.mxu0 0.0
    %108 = vmatprep.subr.mxu0 0.0
    %109 = vmatpush1.msra.mxu0 0.0
    %110 = vmatprep.subr.mxu0 0.0
    %111 = vmatpush1.msra.mxu0 0.0
    %112 = vmatprep.subr.mxu0 0.0
    %113 = vmatpush1.msra.mxu0 0.0
    %114 = vmatprep.subr.mxu0 0.0
    %115 = vmatpush1.msra.mxu0 0.0
    %116 = vmatprep.subr.mxu0 0.0
    %117 = vmatpush1.msra.mxu0 0.0
    %118 = vmatprep.subr.mxu0 0.0
    %119 = vmatpush1.msra.mxu0 0.0
    %120 = vmatprep.subr.mxu0 0.0
    %121 = vmatpush1.msra.mxu0 0.0
    %122 = vmatprep.subr.mxu0 0.0
    %123 = vmatpush1.msra.mxu0 0.0
    %124 = vmatprep.subr.mxu0 0.0
    %125 = vmatpush1.msra.mxu0 0.0
    %126 = vmatprep.subr.mxu0 0.0
    %127 = vmatpush1.msra.mxu0 0.0
    %128 = vmatprep.subr.mxu0 0.0
    %129 = vmatpush1.msra.mxu0 0.0
    %130 = vmatprep.subr.mxu0 0.0
    %131 = vmatpush1.msra.mxu0 0.0
    %132 = vmatprep.subr.mxu0 0.0
    %133 = vmatpush1.msra.mxu0 0.0
    %134 = vmatprep.subr.mxu0 0.0
    %135 = vmatpush1.msra.mxu0 0.0
    %136 = vmatprep.mubr.f32.mxu0 0.0
    %v137 = vand.u32 %v67, 4294901760
    %v138 = vsub.f32 %v67, %v137
    %v139 = vand.u32 %v138, 4294901760
    %v140 = vsub.f32 %v138, %v139
    %v141 = vand.u32 %v140, 4294901760
    %142 = vmatmul.mubr.f32.gmra.mrb[0].mxu0 %v141
    %v143 = vpop.f32.mrb[0].mxu0
    %v144 = vadd.f32 0.0, %v143
    %v145 = vpop.f32.mrb[0].mxu0
    %146 = vmatprep.mubr.f32.mxu0 0.0
    %v147 = vand.u32 %v70, 4294901760
    %v148 = vsub.f32 %v70, %v147
    %v149 = vand.u32 %v148, 4294901760
    %v150 = vsub.f32 %v148, %v149
    %v151 = vand.u32 %v150, 4294901760
    %152 = vmatmul.mubr.f32.gmra.mrb[0].mxu0 %v151
    %v153 = vpop.f32.mrb[0].mxu0
    %v154 = vadd.f32 0.0, %v153
    %v155 = vpop.f32.mrb[0].mxu0
    %156 = vdwg.mxu0
    %157 = vmatprep.subr.mxu0 0.0
    %158 = vmatpush1.msra.mxu0 0.0
    %159 = vmatprep.subr.mxu0 0.0
    %160 = vmatpush1.msra.mxu0 0.0
    %161 = vmatprep.subr.mxu0 0.0
    %162 = vmatpush1.msra.mxu0 0.0
    %163 = vmatprep.subr.mxu0 0.0
    %164 = vmatpush1.msra.mxu0 0.0
    %165 = vmatprep.subr.mxu0 0.0
    %166 = vmatpush1.msra.mxu0 0.0
    %167 = vmatprep.subr.mxu0 0.0
    %168 = vmatpush1.msra.mxu0 0.0
    %169 = vmatprep.subr.mxu0 0.0
    %170 = vmatpush1.msra.mxu0 0.0
    %171 = vmatprep.subr.mxu0 0.0
    %172 = vmatpush1.msra.mxu0 0.0
    %173 = vmatprep.subr.mxu0 0.0
    %174 = vmatpush1.msra.mxu0 0.0
    %175 = vmatprep.subr.mxu0 0.0
    %176 = vmatpush1.msra.mxu0 0.0
    %177 = vmatprep.subr.mxu0 0.0
    %178 = vmatpush1.msra.mxu0 0.0
    %179 = vmatprep.subr.mxu0 0.0
    %180 = vmatpush1.msra.mxu0 0.0
    %181 = vmatprep.subr.mxu0 0.0
    %182 = vmatpush1.msra.mxu0 0.0
    %183 = vmatprep.subr.mxu0 0.0
    %184 = vmatpush1.msra.mxu0 0.0
    %185 = vmatprep.subr.mxu0 0.0
    %186 = vmatpush1.msra.mxu0 0.0
    %187 = vmatprep.subr.mxu0 0.0
    %188 = vmatpush1.msra.mxu0 0.0
    %189 = vmatprep.subr.mxu0 0.0
    %190 = vmatpush1.msra.mxu0 0.0
    %191 = vmatprep.subr.mxu0 0.0
    %192 = vmatpush1.msra.mxu0 0.0
    %193 = vmatprep.subr.mxu0 0.0
    %194 = vmatpush1.msra.mxu0 0.0
    %195 = vmatprep.subr.mxu0 0.0
    %196 = vmatpush1.msra.mxu0 0.0
    %197 = vmatprep.subr.mxu0 0.0
    %198 = vmatpush1.msra.mxu0 0.0
    %199 = vmatprep.subr.mxu0 0.0
    %200 = vmatpush1.msra.mxu0 0.0
    %201 = vmatprep.subr.mxu0 0.0
    %202 = vmatpush1.msra.mxu0 0.0
    %203 = vmatprep.subr.mxu0 0.0
    %204 = vmatpush1.msra.mxu0 0.0
    %205 = vmatprep.subr.mxu0 0.0
    %206 = vmatpush1.msra.mxu0 0.0
    %207 = vmatprep.subr.mxu0 0.0
    %208 = vmatpush1.msra.mxu0 0.0
    %209 = vmatprep.subr.mxu0 0.0
    %210 = vmatpush1.msra.mxu0 0.0
    %211 = vmatprep.subr.mxu0 0.0
    %212 = vmatpush1.msra.mxu0 0.0
    %213 = vmatprep.subr.mxu0 0.0
    %214 = vmatpush1.msra.mxu0 0.0
    %215 = vmatprep.subr.mxu0 0.0
    %216 = vmatpush1.msra.mxu0 0.0
    %217 = vmatprep.subr.mxu0 0.0
    %218 = vmatpush1.msra.mxu0 0.0
    %219 = vmatprep.subr.mxu0 0.0
    %220 = vmatpush1.msra.mxu0 0.0
    %221 = vmatprep.mubr.f32.mxu0 0.0
    %v222 = vand.u32 %v67, 4294901760
    %223 = vmatmul.mubr.f32.gmra.mrb[0].mxu0 %v222
    %v224 = vpop.f32.mrb[0].mxu0
    %v225 = vadd.f32 %v144, %v224
    %v226 = vpop.f32.mrb[0].mxu0
    %227 = vmatprep.mubr.f32.mxu0 0.0
    %v228 = vand.u32 %v70, 4294901760
    %229 = vmatmul.mubr.f32.gmra.mrb[0].mxu0 %v228
    %v230 = vpop.f32.mrb[0].mxu0
    %v231 = vadd.f32 %v154, %v230
    %v232 = vpop.f32.mrb[0].mxu0
    %233 = vdwg.mxu0
    %234 = vmatprep.subr.mxu0 0.0
    %235 = vmatpush1.msra.mxu0 0.0
    %236 = vmatprep.subr.mxu0 0.0
    %237 = vmatpush1.msra.mxu0 0.0
    %238 = vmatprep.subr.mxu0 0.0
    %239 = vmatpush1.msra.mxu0 0.0
    %240 = vmatprep.subr.mxu0 0.0
    %241 = vmatpush1.msra.mxu0 0.0
    %242 = vmatprep.subr.mxu0 0.0
    %243 = vmatpush1.msra.mxu0 0.0
    %244 = vmatprep.subr.mxu0 0.0
    %245 = vmatpush1.msra.mxu0 0.0
    %246 = vmatprep.subr.mxu0 0.0
    %247 = vmatpush1.msra.mxu0 0.0
    %248 = vmatprep.subr.mxu0 0.0
    %249 = vmatpush1.msra.mxu0 0.0
    %250 = vmatprep.subr.mxu0 0.0
    %251 = vmatpush1.msra.mxu0 0.0
    %252 = vmatprep.subr.mxu0 0.0
    %253 = vmatpush1.msra.mxu0 0.0
    %254 = vmatprep.subr.mxu0 0.0
    %255 = vmatpush1.msra.mxu0 0.0
    %256 = vmatprep.subr.mxu0 0.0
    %257 = vmatpush1.msra.mxu0 0.0
    %258 = vmatprep.subr.mxu0 0.0
    %259 = vmatpush1.msra.mxu0 0.0
    %260 = vmatprep.subr.mxu0 0.0
    %261 = vmatpush1.msra.mxu0 0.0
    %262 = vmatprep.subr.mxu0 0.0
    %263 = vmatpush1.msra.mxu0 0.0
    %264 = vmatprep.subr.mxu0 0.0
    %265 = vmatpush1.msra.mxu0 0.0
    %266 = vmatprep.subr.mxu0 0.0
    %267 = vmatpush1.msra.mxu0 0.0
    %268 = vmatprep.subr.mxu0 0.0
    %269 = vmatpush1.msra.mxu0 0.0
    %270 = vmatprep.subr.mxu0 0.0
    %271 = vmatpush1.msra.mxu0 0.0
    %272 = vmatprep.subr.mxu0 0.0
    %273 = vmatpush1.msra.mxu0 0.0
    %274 = vmatprep.subr.mxu0 0.0
    %275 = vmatpush1.msra.mxu0 0.0
    %276 = vmatprep.subr.mxu0 0.0
    %277 = vmatpush1.msra.mxu0 0.0
    %278 = vmatprep.subr.mxu0 0.0
    %279 = vmatpush1.msra.mxu0 0.0
    %280 = vmatprep.subr.mxu0 0.0
    %281 = vmatpush1.msra.mxu0 0.0
    %282 = vmatprep.subr.mxu0 0.0
    %283 = vmatpush1.msra.mxu0 0.0
    %284 = vmatprep.subr.mxu0 0.0
    %285 = vmatpush1.msra.mxu0 0.0
    %286 = vmatprep.subr.mxu0 0.0
    %287 = vmatpush1.msra.mxu0 0.0
    %288 = vmatprep.subr.mxu0 0.0
    %289 = vmatpush1.msra.mxu0 0.0
    %290 = vmatprep.subr.mxu0 0.0
    %291 = vmatpush1.msra.mxu0 0.0
    %292 = vmatprep.subr.mxu0 0.0
    %293 = vmatpush1.msra.mxu0 0.0
    %294 = vmatprep.subr.mxu0 0.0
    %295 = vmatpush1.msra.mxu0 0.0
    %296 = vmatprep.subr.mxu0 0.0
    %297 = vmatpush1.msra.mxu0 0.0
    %298 = vmatprep.mubr.f32.mxu0 0.0
    %v299 = vand.u32 %v67, 4294901760
    %v300 = vsub.f32 %v67, %v299
    %301 = vmatmul.mubr.f32.gmra.mrb[0].mxu0 %v300
    %v302 = vpop.f32.mrb[0].mxu0
    %v303 = vadd.f32 %v225, %v302
    %v304 = vpop.f32.mrb[0].mxu0
    %305 = vmatprep.mubr.f32.mxu0 0.0
    %v306 = vand.u32 %v70, 4294901760
    %v307 = vsub.f32 %v70, %v306
    %308 = vmatmul.mubr.f32.gmra.mrb[0].mxu0 %v307
    %v309 = vpop.f32.mrb[0].mxu0
    %v310 = vadd.f32 %v231, %v309
    %v311 = vpop.f32.mrb[0].mxu0
    %312 = vdwg.mxu0
    %313 = vmatprep.subr.mxu0 0.0
    %314 = vmatpush1.msra.mxu0 1.0
    %315 = vmatprep.subr.mxu0 0.0
    %316 = vmatpush1.msra.mxu0 1.0
    %317 = vmatprep.subr.mxu0 0.0
    %318 = vmatpush1.msra.mxu0 1.0
    %319 = vmatprep.subr.mxu0 0.0
    %320 = vmatpush1.msra.mxu0 1.0
    %321 = vmatprep.subr.mxu0 0.0
    %322 = vmatpush1.msra.mxu0 0.0
    %323 = vmatprep.subr.mxu0 0.0
    %324 = vmatpush1.msra.mxu0 0.0
    %325 = vmatprep.subr.mxu0 0.0
    %326 = vmatpush1.msra.mxu0 0.0
    %327 = vmatprep.subr.mxu0 0.0
    %328 = vmatpush1.msra.mxu0 0.0
    %329 = vmatprep.subr.mxu0 0.0
    %330 = vmatpush1.msra.mxu0 0.0
    %331 = vmatprep.subr.mxu0 0.0
    %332 = vmatpush1.msra.mxu0 0.0
    %333 = vmatprep.subr.mxu0 0.0
    %334 = vmatpush1.msra.mxu0 0.0
    %335 = vmatprep.subr.mxu0 0.0
    %336 = vmatpush1.msra.mxu0 0.0
    %337 = vmatprep.subr.mxu0 0.0
    %338 = vmatpush1.msra.mxu0 0.0
    %339 = vmatprep.subr.mxu0 0.0
    %340 = vmatpush1.msra.mxu0 0.0
    %341 = vmatprep.subr.mxu0 0.0
    %342 = vmatpush1.msra.mxu0 0.0
    %343 = vmatprep.subr.mxu0 0.0
    %344 = vmatpush1.msra.mxu0 0.0
    %345 = vmatprep.subr.mxu0 0.0
    %346 = vmatpush1.msra.mxu0 0.0
    %347 = vmatprep.subr.mxu0 0.0
    %348 = vmatpush1.msra.mxu0 0.0
    %349 = vmatprep.subr.mxu0 0.0
    %350 = vmatpush1.msra.mxu0 0.0
    %351 = vmatprep.subr.mxu0 0.0
    %352 = vmatpush1.msra.mxu0 0.0
    %353 = vmatprep.subr.mxu0 0.0
    %354 = vmatpush1.msra.mxu0 0.0
    %355 = vmatprep.subr.mxu0 0.0
    %356 = vmatpush1.msra.mxu0 0.0
    %357 = vmatprep.subr.mxu0 0.0
    %358 = vmatpush1.msra.mxu0 0.0
    %359 = vmatprep.subr.mxu0 0.0
    %360 = vmatpush1.msra.mxu0 0.0
    %361 = vmatprep.subr.mxu0 0.0
    %362 = vmatpush1.msra.mxu0 0.0
    %363 = vmatprep.subr.mxu0 0.0
    %364 = vmatpush1.msra.mxu0 0.0
    %365 = vmatprep.subr.mxu0 0.0
    %366 = vmatpush1.msra.mxu0 0.0
    %367 = vmatprep.subr.mxu0 0.0
    %368 = vmatpush1.msra.mxu0 0.0
    %369 = vmatprep.subr.mxu0 0.0
    %370 = vmatpush1.msra.mxu0 0.0
    %371 = vmatprep.subr.mxu0 0.0
    %372 = vmatpush1.msra.mxu0 0.0
    %373 = vmatprep.subr.mxu0 0.0
    %374 = vmatpush1.msra.mxu0 0.0
    %375 = vmatprep.subr.mxu0 0.0
    %376 = vmatpush1.msra.mxu0 0.0
    %377 = vmatprep.mubr.f32.mxu0 0.0
    %v378 = vand.u32 %v67, 4294901760
    %v379 = vsub.f32 %v67, %v378
    %v380 = vand.u32 %v379, 4294901760
    %381 = vmatmul.mubr.f32.gmra.mrb[0].mxu0 %v380
    %v382 = vpop.f32.mrb[0].mxu0
    %v383 = vadd.f32 %v303, %v382
    %v384 = vpop.f32.mrb[0].mxu0
    %385 = vmatprep.mubr.f32.mxu0 0.0
    %v386 = vand.u32 %v70, 4294901760
    %v387 = vsub.f32 %v70, %v386
    %v388 = vand.u32 %v387, 4294901760
    %389 = vmatmul.mubr.f32.gmra.mrb[0].mxu0 %v388
    %v390 = vpop.f32.mrb[0].mxu0
    %v391 = vadd.f32 %v310, %v390
    %v392 = vpop.f32.mrb[0].mxu0
    %393 = vdwg.mxu0
    %394 = vmatprep.subr.mxu0 0.0
    %395 = vmatpush1.msra.mxu0 0.0
    %396 = vmatprep.subr.mxu0 0.0
    %397 = vmatpush1.msra.mxu0 0.0
    %398 = vmatprep.subr.mxu0 0.0
    %399 = vmatpush1.msra.mxu0 0.0
    %400 = vmatprep.subr.mxu0 0.0
    %401 = vmatpush1.msra.mxu0 0.0
    %402 = vmatprep.subr.mxu0 0.0
    %403 = vmatpush1.msra.mxu0 0.0
    %404 = vmatprep.subr.mxu0 0.0
    %405 = vmatpush1.msra.mxu0 0.0
    %406 = vmatprep.subr.mxu0 0.0
    %407 = vmatpush1.msra.mxu0 0.0
    %408 = vmatprep.subr.mxu0 0.0
    %409 = vmatpush1.msra.mxu0 0.0
    %410 = vmatprep.subr.mxu0 0.0
    %411 = vmatpush1.msra.mxu0 0.0
    %412 = vmatprep.subr.mxu0 0.0
    %413 = vmatpush1.msra.mxu0 0.0
    %414 = vmatprep.subr.mxu0 0.0
    %415 = vmatpush1.msra.mxu0 0.0
    %416 = vmatprep.subr.mxu0 0.0
    %417 = vmatpush1.msra.mxu0 0.0
    %418 = vmatprep.subr.mxu0 0.0
    %419 = vmatpush1.msra.mxu0 0.0
    %420 = vmatprep.subr.mxu0 0.0
    %421 = vmatpush1.msra.mxu0 0.0
    %422 = vmatprep.subr.mxu0 0.0
    %423 = vmatpush1.msra.mxu0 0.0
    %424 = vmatprep.subr.mxu0 0.0
    %425 = vmatpush1.msra.mxu0 0.0
    %426 = vmatprep.subr.mxu0 0.0
    %427 = vmatpush1.msra.mxu0 0.0
    %428 = vmatprep.subr.mxu0 0.0
    %429 = vmatpush1.msra.mxu0 0.0
    %430 = vmatprep.subr.mxu0 0.0
    %431 = vmatpush1.msra.mxu0 0.0
    %432 = vmatprep.subr.mxu0 0.0
    %433 = vmatpush1.msra.mxu0 0.0
    %434 = vmatprep.subr.mxu0 0.0
    %435 = vmatpush1.msra.mxu0 0.0
    %436 = vmatprep.subr.mxu0 0.0
    %437 = vmatpush1.msra.mxu0 0.0
    %438 = vmatprep.subr.mxu0 0.0
    %439 = vmatpush1.msra.mxu0 0.0
    %440 = vmatprep.subr.mxu0 0.0
    %441 = vmatpush1.msra.mxu0 0.0
    %442 = vmatprep.subr.mxu0 0.0
    %443 = vmatpush1.msra.mxu0 0.0
    %444 = vmatprep.subr.mxu0 0.0
    %445 = vmatpush1.msra.mxu0 0.0
    %446 = vmatprep.subr.mxu0 0.0
    %447 = vmatpush1.msra.mxu0 0.0
    %448 = vmatprep.subr.mxu0 0.0
    %449 = vmatpush1.msra.mxu0 0.0
    %450 = vmatprep.subr.mxu0 0.0
    %451 = vmatpush1.msra.mxu0 0.0
    %452 = vmatprep.subr.mxu0 0.0
    %453 = vmatpush1.msra.mxu0 0.0
    %454 = vmatprep.subr.mxu0 0.0
    %455 = vmatpush1.msra.mxu0 0.0
    %456 = vmatprep.subr.mxu0 0.0
    %457 = vmatpush1.msra.mxu0 0.0
    %458 = vmatprep.mubr.f32.mxu0 0.0
    %v459 = vand.u32 %v67, 4294901760
    %460 = vmatmul.mubr.f32.gmra.mrb[0].mxu0 %v459
    %v461 = vpop.f32.mrb[0].mxu0
    %v462 = vadd.f32 %v383, %v461
    %v463 = vpop.f32.mrb[0].mxu0
    %464 = vmatprep.mubr.f32.mxu0 0.0
    %v465 = vand.u32 %v70, 4294901760
    %466 = vmatmul.mubr.f32.gmra.mrb[0].mxu0 %v465
    %v467 = vpop.f32.mrb[0].mxu0
    %v468 = vadd.f32 %v391, %v467
    %v469 = vpop.f32.mrb[0].mxu0
    %470 = vdwg.mxu0
    %471 = vmatprep.subr.mxu0 0.0
    %472 = vmatpush1.msra.mxu0 1.0
    %473 = vmatprep.subr.mxu0 0.0
    %474 = vmatpush1.msra.mxu0 1.0
    %475 = vmatprep.subr.mxu0 0.0
    %476 = vmatpush1.msra.mxu0 1.0
    %477 = vmatprep.subr.mxu0 0.0
    %478 = vmatpush1.msra.mxu0 1.0
    %479 = vmatprep.subr.mxu0 0.0
    %480 = vmatpush1.msra.mxu0 0.0
    %481 = vmatprep.subr.mxu0 0.0
    %482 = vmatpush1.msra.mxu0 0.0
    %483 = vmatprep.subr.mxu0 0.0
    %484 = vmatpush1.msra.mxu0 0.0
    %485 = vmatprep.subr.mxu0 0.0
    %486 = vmatpush1.msra.mxu0 0.0
    %487 = vmatprep.subr.mxu0 0.0
    %488 = vmatpush1.msra.mxu0 0.0
    %489 = vmatprep.subr.mxu0 0.0
    %490 = vmatpush1.msra.mxu0 0.0
    %491 = vmatprep.subr.mxu0 0.0
    %492 = vmatpush1.msra.mxu0 0.0
    %493 = vmatprep.subr.mxu0 0.0
    %494 = vmatpush1.msra.mxu0 0.0
    %495 = vmatprep.subr.mxu0 0.0
    %496 = vmatpush1.msra.mxu0 0.0
    %497 = vmatprep.subr.mxu0 0.0
    %498 = vmatpush1.msra.mxu0 0.0
    %499 = vmatprep.subr.mxu0 0.0
    %500 = vmatpush1.msra.mxu0 0.0
    %501 = vmatprep.subr.mxu0 0.0
    %502 = vmatpush1.msra.mxu0 0.0
    %503 = vmatprep.subr.mxu0 0.0
    %504 = vmatpush1.msra.mxu0 0.0
    %505 = vmatprep.subr.mxu0 0.0
    %506 = vmatpush1.msra.mxu0 0.0
    %507 = vmatprep.subr.mxu0 0.0
    %508 = vmatpush1.msra.mxu0 0.0
    %509 = vmatprep.subr.mxu0 0.0
    %510 = vmatpush1.msra.mxu0 0.0
    %511 = vmatprep.subr.mxu0 0.0
    %512 = vmatpush1.msra.mxu0 0.0
    %513 = vmatprep.subr.mxu0 0.0
    %514 = vmatpush1.msra.mxu0 0.0
    %515 = vmatprep.subr.mxu0 0.0
    %516 = vmatpush1.msra.mxu0 0.0
    %517 = vmatprep.subr.mxu0 0.0
    %518 = vmatpush1.msra.mxu0 0.0
    %519 = vmatprep.subr.mxu0 0.0
    %520 = vmatpush1.msra.mxu0 0.0
    %521 = vmatprep.subr.mxu0 0.0
    %522 = vmatpush1.msra.mxu0 0.0
    %523 = vmatprep.subr.mxu0 0.0
    %524 = vmatpush1.msra.mxu0 0.0
    %525 = vmatprep.subr.mxu0 0.0
    %526 = vmatpush1.msra.mxu0 0.0
    %527 = vmatprep.subr.mxu0 0.0
    %528 = vmatpush1.msra.mxu0 0.0
    %529 = vmatprep.subr.mxu0 0.0
    %530 = vmatpush1.msra.mxu0 0.0
    %531 = vmatprep.subr.mxu0 0.0
    %532 = vmatpush1.msra.mxu0 0.0
    %533 = vmatprep.subr.mxu0 0.0
    %534 = vmatpush1.msra.mxu0 0.0
    %535 = vmatprep.mubr.f32.mxu0 0.0
    %v536 = vand.u32 %v67, 4294901760
    %537 = vmatmul.mubr.f32.gmra.mrb[0].mxu0 %v536
    %v538 = vpop.f32.mrb[0].mxu0
    %v539 = vadd.f32 %v462, %v538
    %v540 = vpop.f32.mrb[0].mxu0
    %541 = vmatprep.mubr.f32.mxu0 0.0
    %v542 = vand.u32 %v70, 4294901760
    %543 = vmatmul.mubr.f32.gmra.mrb[0].mxu0 %v542
    %v544 = vpop.f32.mrb[0].mxu0
    %v545 = vadd.f32 %v468, %v544
    %v546 = vpop.f32.mrb[0].mxu0
    %547 = vdwg.mxu0
    %v548 = vld [vmem:[#allocation6] sm:$0xff]
    %v549 = vld [vmem:[#allocation6 + $0x8] sm:$0xff]
    %v550 = vsub.f32 %v55, %v548
    %v551 = vsub.f32 %v56, %v549
    %v552 = vadd.f32 %v550, 1e-06
    %v553 = vadd.f32 %v551, 1e-06
    %v554 = vmul.f32 %v552, %v552
    %v555 = vmul.f32 %v553, %v553
    %v557 = vsel %vm65, %v554, 0
    %v560 = vsel %vm65, %v555, 0
    %562 = vmatprep.subr.mxu0 0.0
    %563 = vmatpush1.msra.mxu0 1.0
    %564 = vmatprep.subr.mxu0 0.0
    %565 = vmatpush1.msra.mxu0 1.0
    %566 = vmatprep.subr.mxu0 0.0
    %567 = vmatpush1.msra.mxu0 1.0
    %568 = vmatprep.subr.mxu0 0.0
    %569 = vmatpush1.msra.mxu0 1.0
    %570 = vmatprep.subr.mxu0 0.0
    %571 = vmatpush1.msra.mxu0 0.0
    %572 = vmatprep.subr.mxu0 0.0
    %573 = vmatpush1.msra.mxu0 0.0
    %574 = vmatprep.subr.mxu0 0.0
    %575 = vmatpush1.msra.mxu0 0.0
    %576 = vmatprep.subr.mxu0 0.0
    %577 = vmatpush1.msra.mxu0 0.0
    %578 = vmatprep.subr.mxu0 0.0
    %579 = vmatpush1.msra.mxu0 0.0
    %580 = vmatprep.subr.mxu0 0.0
    %581 = vmatpush1.msra.mxu0 0.0
    %582 = vmatprep.subr.mxu0 0.0
    %583 = vmatpush1.msra.mxu0 0.0
    %584 = vmatprep.subr.mxu0 0.0
    %585 = vmatpush1.msra.mxu0 0.0
    %586 = vmatprep.subr.mxu0 0.0
    %587 = vmatpush1.msra.mxu0 0.0
    %588 = vmatprep.subr.mxu0 0.0
    %589 = vmatpush1.msra.mxu0 0.0
    %590 = vmatprep.subr.mxu0 0.0
    %591 = vmatpush1.msra.mxu0 0.0
    %592 = vmatprep.subr.mxu0 0.0
    %593 = vmatpush1.msra.mxu0 0.0
    %594 = vmatprep.subr.mxu0 0.0
    %595 = vmatpush1.msra.mxu0 0.0
    %596 = vmatprep.subr.mxu0 0.0
    %597 = vmatpush1.msra.mxu0 0.0
    %598 = vmatprep.subr.mxu0 0.0
    %599 = vmatpush1.msra.mxu0 0.0
    %600 = vmatprep.subr.mxu0 0.0
    %601 = vmatpush1.msra.mxu0 0.0
    %602 = vmatprep.subr.mxu0 0.0
    %603 = vmatpush1.msra.mxu0 0.0
    %604 = vmatprep.subr.mxu0 0.0
    %605 = vmatpush1.msra.mxu0 0.0
    %606 = vmatprep.subr.mxu0 0.0
    %607 = vmatpush1.msra.mxu0 0.0
    %608 = vmatprep.subr.mxu0 0.0
    %609 = vmatpush1.msra.mxu0 0.0
    %610 = vmatprep.subr.mxu0 0.0
    %611 = vmatpush1.msra.mxu0 0.0
    %612 = vmatprep.subr.mxu0 0.0
    %613 = vmatpush1.msra.mxu0 0.0
    %614 = vmatprep.subr.mxu0 0.0
    %615 = vmatpush1.msra.mxu0 0.0
    %616 = vmatprep.subr.mxu0 0.0
    %617 = vmatpush1.msra.mxu0 0.0
    %618 = vmatprep.subr.mxu0 0.0
    %619 = vmatpush1.msra.mxu0 0.0
    %620 = vmatprep.subr.mxu0 0.0
    %621 = vmatpush1.msra.mxu0 0.0
    %622 = vmatprep.subr.mxu0 0.0
    %623 = vmatpush1.msra.mxu0 0.0
    %624 = vmatprep.subr.mxu0 0.0
    %625 = vmatpush1.msra.mxu0 0.0
    %626 = vmatprep.mubr.f32.mxu0 0.0
    %v627 = vand.u32 %v557, 4294901760
    %v628 = vsub.f32 %v557, %v627
    %v629 = vand.u32 %v628, 4294901760
    %v630 = vsub.f32 %v628, %v629
    %v631 = vand.u32 %v630, 4294901760
    %632 = vmatmul.mubr.f32.gmra.mrb[0].mxu0 %v631
    %v633 = vpop.f32.mrb[0].mxu0
    %v634 = vadd.f32 0.0, %v633
    %v635 = vpop.f32.mrb[0].mxu0
    %636 = vmatprep.mubr.f32.mxu0 0.0
    %v637 = vand.u32 %v560, 4294901760
    %v638 = vsub.f32 %v560, %v637
    %v639 = vand.u32 %v638, 4294901760
    %v640 = vsub.f32 %v638, %v639
    %v641 = vand.u32 %v640, 4294901760
    %642 = vmatmul.mubr.f32.gmra.mrb[0].mxu0 %v641
    %v643 = vpop.f32.mrb[0].mxu0
    %v644 = vadd.f32 0.0, %v643
    %v645 = vpop.f32.mrb[0].mxu0
    %646 = vdwg.mxu0
    %647 = vmatprep.subr.mxu0 0.0
    %648 = vmatpush1.msra.mxu0 0.0
    %649 = vmatprep.subr.mxu0 0.0
    %650 = vmatpush1.msra.mxu0 0.0
    %651 = vmatprep.subr.mxu0 0.0
    %652 = vmatpush1.msra.mxu0 0.0
    %653 = vmatprep.subr.mxu0 0.0
    %654 = vmatpush1.msra.mxu0 0.0
    %655 = vmatprep.subr.mxu0 0.0
    %656 = vmatpush1.msra.mxu0 0.0
    %657 = vmatprep.subr.mxu0 0.0
    %658 = vmatpush1.msra.mxu0 0.0
    %659 = vmatprep.subr.mxu0 0.0
    %660 = vmatpush1.msra.mxu0 0.0
    %661 = vmatprep.subr.mxu0 0.0
    %662 = vmatpush1.msra.mxu0 0.0
    %663 = vmatprep.subr.mxu0 0.0
    %664 = vmatpush1.msra.mxu0 0.0
    %665 = vmatprep.subr.mxu0 0.0
    %666 = vmatpush1.msra.mxu0 0.0
    %667 = vmatprep.subr.mxu0 0.0
    %668 = vmatpush1.msra.mxu0 0.0
    %669 = vmatprep.subr.mxu0 0.0
    %670 = vmatpush1.msra.mxu0 0.0
    %671 = vmatprep.subr.mxu0 0.0
    %672 = vmatpush1.msra.mxu0 0.0
    %673 = vmatprep.subr.mxu0 0.0
    %674 = vmatpush1.msra.mxu0 0.0
    %675 = vmatprep.subr.mxu0 0.0
    %676 = vmatpush1.msra.mxu0 0.0
    %677 = vmatprep.subr.mxu0 0.0
    %678 = vmatpush1.msra.mxu0 0.0
    %679 = vmatprep.subr.mxu0 0.0
    %680 = vmatpush1.msra.mxu0 0.0
    %681 = vmatprep.subr.mxu0 0.0
    %682 = vmatpush1.msra.mxu0 0.0
    %683 = vmatprep.subr.mxu0 0.0
    %684 = vmatpush1.msra.mxu0 0.0
    %685 = vmatprep.subr.mxu0 0.0
    %686 = vmatpush1.msra.mxu0 0.0
    %687 = vmatprep.subr.mxu0 0.0
    %688 = vmatpush1.msra.mxu0 0.0
    %689 = vmatprep.subr.mxu0 0.0
    %690 = vmatpush1.msra.mxu0 0.0
    %691 = vmatprep.subr.mxu0 0.0
    %692 = vmatpush1.msra.mxu0 0.0
    %693 = vmatprep.subr.mxu0 0.0
    %694 = vmatpush1.msra.mxu0 0.0
    %695 = vmatprep.subr.mxu0 0.0
    %696 = vmatpush1.msra.mxu0 0.0
    %697 = vmatprep.subr.mxu0 0.0
    %698 = vmatpush1.msra.mxu0 0.0
    %699 = vmatprep.subr.mxu0 0.0
    %700 = vmatpush1.msra.mxu0 0.0
    %701 = vmatprep.subr.mxu0 0.0
    %702 = vmatpush1.msra.mxu0 0.0
    %703 = vmatprep.subr.mxu0 0.0
    %704 = vmatpush1.msra.mxu0 0.0
    %705 = vmatprep.subr.mxu0 0.0
    %706 = vmatpush1.msra.mxu0 0.0
    %707 = vmatprep.subr.mxu0 0.0
    %708 = vmatpush1.msra.mxu0 0.0
    %709 = vmatprep.subr.mxu0 0.0
    %710 = vmatpush1.msra.mxu0 0.0
    %711 = vmatprep.mubr.f32.mxu0 0.0
    %v712 = vand.u32 %v557, 4294901760
    %713 = vmatmul.mubr.f32.gmra.mrb[0].mxu0 %v712
    %v714 = vpop.f32.mrb[0].mxu0
    %v715 = vadd.f32 %v634, %v714
    %v716 = vpop.f32.mrb[0].mxu0
    %717 = vmatprep.mubr.f32.mxu0 0.0
    %v718 = vand.u32 %v560, 4294901760
    %719 = vmatmul.mubr.f32.gmra.mrb[0].mxu0 %v718
    %v720 = vpop.f32.mrb[0].mxu0
    %v721 = vadd.f32 %v644, %v720
    %v722 = vpop.f32.mrb[0].mxu0
    %723 = vdwg.mxu0
    %724 = vmatprep.subr.mxu0 0.0
    %725 = vmatpush1.msra.mxu0 0.0
    %726 = vmatprep.subr.mxu0 0.0
    %727 = vmatpush1.msra.mxu0 0.0
    %728 = vmatprep.subr.mxu0 0.0
    %729 = vmatpush1.msra.mxu0 0.0
    %730 = vmatprep.subr.mxu0 0.0
    %731 = vmatpush1.msra.mxu0 0.0
    %732 = vmatprep.subr.mxu0 0.0
    %733 = vmatpush1.msra.mxu0 0.0
    %734 = vmatprep.subr.mxu0 0.0
    %735 = vmatpush1.msra.mxu0 0.0
    %736 = vmatprep.subr.mxu0 0.0
    %737 = vmatpush1.msra.mxu0 0.0
    %738 = vmatprep.subr.mxu0 0.0
    %739 = vmatpush1.msra.mxu0 0.0
    %740 = vmatprep.subr.mxu0 0.0
    %741 = vmatpush1.msra.mxu0 0.0
    %742 = vmatprep.subr.mxu0 0.0
    %743 = vmatpush1.msra.mxu0 0.0
    %744 = vmatprep.subr.mxu0 0.0
    %745 = vmatpush1.msra.mxu0 0.0
    %746 = vmatprep.subr.mxu0 0.0
    %747 = vmatpush1.msra.mxu0 0.0
    %748 = vmatprep.subr.mxu0 0.0
    %749 = vmatpush1.msra.mxu0 0.0
    %750 = vmatprep.subr.mxu0 0.0
    %751 = vmatpush1.msra.mxu0 0.0
    %752 = vmatprep.subr.mxu0 0.0
    %753 = vmatpush1.msra.mxu0 0.0
    %754 = vmatprep.subr.mxu0 0.0
    %755 = vmatpush1.msra.mxu0 0.0
    %756 = vmatprep.subr.mxu0 0.0
    %757 = vmatpush1.msra.mxu0 0.0
    %758 = vmatprep.subr.mxu0 0.0
    %759 = vmatpush1.msra.mxu0 0.0
    %760 = vmatprep.subr.mxu0 0.0
    %761 = vmatpush1.msra.mxu0 0.0
    %762 = vmatprep.subr.mxu0 0.0
    %763 = vmatpush1.msra.mxu0 0.0
    %764 = vmatprep.subr.mxu0 0.0
    %765 = vmatpush1.msra.mxu0 0.0
    %766 = vmatprep.subr.mxu0 0.0
    %767 = vmatpush1.msra.mxu0 0.0
    %768 = vmatprep.subr.mxu0 0.0
    %769 = vmatpush1.msra.mxu0 0.0
    %770 = vmatprep.subr.mxu0 0.0
    %771 = vmatpush1.msra.mxu0 0.0
    %772 = vmatprep.subr.mxu0 0.0
    %773 = vmatpush1.msra.mxu0 0.0
    %774 = vmatprep.subr.mxu0 0.0
    %775 = vmatpush1.msra.mxu0 0.0
    %776 = vmatprep.subr.mxu0 0.0
    %777 = vmatpush1.msra.mxu0 0.0
    %778 = vmatprep.subr.mxu0 0.0
    %779 = vmatpush1.msra.mxu0 0.0
    %780 = vmatprep.subr.mxu0 0.0
    %781 = vmatpush1.msra.mxu0 0.0
    %782 = vmatprep.subr.mxu0 0.0
    %783 = vmatpush1.msra.mxu0 0.0
    %784 = vmatprep.subr.mxu0 0.0
    %785 = vmatpush1.msra.mxu0 0.0
    %786 = vmatprep.subr.mxu0 0.0
    %787 = vmatpush1.msra.mxu0 0.0
    %788 = vmatprep.mubr.f32.mxu0 0.0
    %v789 = vand.u32 %v557, 4294901760
    %v790 = vsub.f32 %v557, %v789
    %791 = vmatmul.mubr.f32.gmra.mrb[0].mxu0 %v790
    %v792 = vpop.f32.mrb[0].mxu0
    %v793 = vadd.f32 %v715, %v792
    %v794 = vpop.f32.mrb[0].mxu0
    %795 = vmatprep.mubr.f32.mxu0 0.0
    %v796 = vand.u32 %v560, 4294901760
    %v797 = vsub.f32 %v560, %v796
    %798 = vmatmul.mubr.f32.gmra.mrb[0].mxu0 %v797
    %v799 = vpop.f32.mrb[0].mxu0
    %v800 = vadd.f32 %v721, %v799
    %v801 = vpop.f32.mrb[0].mxu0
    %802 = vdwg.mxu0
    %803 = vmatprep.subr.mxu0 0.0
    %804 = vmatpush1.msra.mxu0 1.0
    %805 = vmatprep.subr.mxu0 0.0
    %806 = vmatpush1.msra.mxu0 1.0
    %807 = vmatprep.subr.mxu0 0.0
    %808 = vmatpush1.msra.mxu0 1.0
    %809 = vmatprep.subr.mxu0 0.0
    %810 = vmatpush1.msra.mxu0 1.0
    %811 = vmatprep.subr.mxu0 0.0
    %812 = vmatpush1.msra.mxu0 0.0
    %813 = vmatprep.subr.mxu0 0.0
    %814 = vmatpush1.msra.mxu0 0.0
    %815 = vmatprep.subr.mxu0 0.0
    %816 = vmatpush1.msra.mxu0 0.0
    %817 = vmatprep.subr.mxu0 0.0
    %818 = vmatpush1.msra.mxu0 0.0
    %819 = vmatprep.subr.mxu0 0.0
    %820 = vmatpush1.msra.mxu0 0.0
    %821 = vmatprep.subr.mxu0 0.0
    %822 = vmatpush1.msra.mxu0 0.0
    %823 = vmatprep.subr.mxu0 0.0
    %824 = vmatpush1.msra.mxu0 0.0
    %825 = vmatprep.subr.mxu0 0.0
    %826 = vmatpush1.msra.mxu0 0.0
    %827 = vmatprep.subr.mxu0 0.0
    %828 = vmatpush1.msra.mxu0 0.0
    %829 = vmatprep.subr.mxu0 0.0
    %830 = vmatpush1.msra.mxu0 0.0
    %831 = vmatprep.subr.mxu0 0.0
    %832 = vmatpush1.msra.mxu0 0.0
    %833 = vmatprep.subr.mxu0 0.0
    %834 = vmatpush1.msra.mxu0 0.0
    %835 = vmatprep.subr.mxu0 0.0
    %836 = vmatpush1.msra.mxu0 0.0
    %837 = vmatprep.subr.mxu0 0.0
    %838 = vmatpush1.msra.mxu0 0.0
    %839 = vmatprep.subr.mxu0 0.0
    %840 = vmatpush1.msra.mxu0 0.0
    %841 = vmatprep.subr.mxu0 0.0
    %842 = vmatpush1.msra.mxu0 0.0
    %843 = vmatprep.subr.mxu0 0.0
    %844 = vmatpush1.msra.mxu0 0.0
    %845 = vmatprep.subr.mxu0 0.0
    %846 = vmatpush1.msra.mxu0 0.0
    %847 = vmatprep.subr.mxu0 0.0
    %848 = vmatpush1.msra.mxu0 0.0
    %849 = vmatprep.subr.mxu0 0.0
    %850 = vmatpush1.msra.mxu0 0.0
    %851 = vmatprep.subr.mxu0 0.0
    %852 = vmatpush1.msra.mxu0 0.0
    %853 = vmatprep.subr.mxu0 0.0
    %854 = vmatpush1.msra.mxu0 0.0
    %855 = vmatprep.subr.mxu0 0.0
    %856 = vmatpush1.msra.mxu0 0.0
    %857 = vmatprep.subr.mxu0 0.0
    %858 = vmatpush1.msra.mxu0 0.0
    %859 = vmatprep.subr.mxu0 0.0
    %860 = vmatpush1.msra.mxu0 0.0
    %861 = vmatprep.subr.mxu0 0.0
    %862 = vmatpush1.msra.mxu0 0.0
    %863 = vmatprep.subr.mxu0 0.0
    %864 = vmatpush1.msra.mxu0 0.0
    %865 = vmatprep.subr.mxu0 0.0
    %866 = vmatpush1.msra.mxu0 0.0
    %867 = vmatprep.mubr.f32.mxu0 0.0
    %v868 = vand.u32 %v557, 4294901760
    %v869 = vsub.f32 %v557, %v868
    %v870 = vand.u32 %v869, 4294901760
    %871 = vmatmul.mubr.f32.gmra.mrb[0].mxu0 %v870
    %v872 = vpop.f32.mrb[0].mxu0
    %v873 = vadd.f32 %v793, %v872
    %v874 = vpop.f32.mrb[0].mxu0
    %875 = vmatprep.mubr.f32.mxu0 0.0
    %v876 = vand.u32 %v560, 4294901760
    %v877 = vsub.f32 %v560, %v876
    %v878 = vand.u32 %v877, 4294901760
    %879 = vmatmul.mubr.f32.gmra.mrb[0].mxu0 %v878
    %v880 = vpop.f32.mrb[0].mxu0
    %v881 = vadd.f32 %v800, %v880
    %v882 = vpop.f32.mrb[0].mxu0
    %883 = vdwg.mxu0
    %884 = vmatprep.subr.mxu0 0.0
    %885 = vmatpush1.msra.mxu0 0.0
    %886 = vmatprep.subr.mxu0 0.0
    %887 = vmatpush1.msra.mxu0 0.0
    %888 = vmatprep.subr.mxu0 0.0
    %889 = vmatpush1.msra.mxu0 0.0
    %890 = vmatprep.subr.mxu0 0.0
    %891 = vmatpush1.msra.mxu0 0.0
    %892 = vmatprep.subr.mxu0 0.0
    %893 = vmatpush1.msra.mxu0 0.0
    %894 = vmatprep.subr.mxu0 0.0
    %895 = vmatpush1.msra.mxu0 0.0
    %896 = vmatprep.subr.mxu0 0.0
    %897 = vmatpush1.msra.mxu0 0.0
    %898 = vmatprep.subr.mxu0 0.0
    %899 = vmatpush1.msra.mxu0 0.0
    %900 = vmatprep.subr.mxu0 0.0
    %901 = vmatpush1.msra.mxu0 0.0
    %902 = vmatprep.subr.mxu0 0.0
    %903 = vmatpush1.msra.mxu0 0.0
    %904 = vmatprep.subr.mxu0 0.0
    %905 = vmatpush1.msra.mxu0 0.0
    %906 = vmatprep.subr.mxu0 0.0
    %907 = vmatpush1.msra.mxu0 0.0
    %908 = vmatprep.subr.mxu0 0.0
    %909 = vmatpush1.msra.mxu0 0.0
    %910 = vmatprep.subr.mxu0 0.0
    %911 = vmatpush1.msra.mxu0 0.0
    %912 = vmatprep.subr.mxu0 0.0
    %913 = vmatpush1.msra.mxu0 0.0
    %914 = vmatprep.subr.mxu0 0.0
    %915 = vmatpush1.msra.mxu0 0.0
    %916 = vmatprep.subr.mxu0 0.0
    %917 = vmatpush1.msra.mxu0 0.0
    %918 = vmatprep.subr.mxu0 0.0
    %919 = vmatpush1.msra.mxu0 0.0
    %920 = vmatprep.subr.mxu0 0.0
    %921 = vmatpush1.msra.mxu0 0.0
    %922 = vmatprep.subr.mxu0 0.0
    %923 = vmatpush1.msra.mxu0 0.0
    %924 = vmatprep.subr.mxu0 0.0
    %925 = vmatpush1.msra.mxu0 0.0
    %926 = vmatprep.subr.mxu0 0.0
    %927 = vmatpush1.msra.mxu0 0.0
    %928 = vmatprep.subr.mxu0 0.0
    %929 = vmatpush1.msra.mxu0 0.0
    %930 = vmatprep.subr.mxu0 0.0
    %931 = vmatpush1.msra.mxu0 0.0
    %932 = vmatprep.subr.mxu0 0.0
    %933 = vmatpush1.msra.mxu0 0.0
    %934 = vmatprep.subr.mxu0 0.0
    %935 = vmatpush1.msra.mxu0 0.0
    %936 = vmatprep.subr.mxu0 0.0
    %937 = vmatpush1.msra.mxu0 0.0
    %938 = vmatprep.subr.mxu0 0.0
    %939 = vmatpush1.msra.mxu0 0.0
    %940 = vmatprep.subr.mxu0 0.0
    %941 = vmatpush1.msra.mxu0 0.0
    %942 = vmatprep.subr.mxu0 0.0
    %943 = vmatpush1.msra.mxu0 0.0
    %944 = vmatprep.subr.mxu0 0.0
    %945 = vmatpush1.msra.mxu0 0.0
    %946 = vmatprep.subr.mxu0 0.0
    %947 = vmatpush1.msra.mxu0 0.0
    %948 = vmatprep.mubr.f32.mxu0 0.0
    %v949 = vand.u32 %v557, 4294901760
    %950 = vmatmul.mubr.f32.gmra.mrb[0].mxu0 %v949
    %v951 = vpop.f32.mrb[0].mxu0
    %v952 = vadd.f32 %v873, %v951
    %v953 = vpop.f32.mrb[0].mxu0
    %954 = vmatprep.mubr.f32.mxu0 0.0
    %v955 = vand.u32 %v560, 4294901760
    %956 = vmatmul.mubr.f32.gmra.mrb[0].mxu0 %v955
    %v957 = vpop.f32.mrb[0].mxu0
    %v958 = vadd.f32 %v881, %v957
    %v959 = vpop.f32.mrb[0].mxu0
    %960 = vdwg.mxu0
    %961 = vmatprep.subr.mxu0 0.0
    %962 = vmatpush1.msra.mxu0 1.0
    %963 = vmatprep.subr.mxu0 0.0
    %964 = vmatpush1.msra.mxu0 1.0
    %965 = vmatprep.subr.mxu0 0.0
    %966 = vmatpush1.msra.mxu0 1.0
    %967 = vmatprep.subr.mxu0 0.0
    %968 = vmatpush1.msra.mxu0 1.0
    %969 = vmatprep.subr.mxu0 0.0
    %970 = vmatpush1.msra.mxu0 0.0
    %971 = vmatprep.subr.mxu0 0.0
    %972 = vmatpush1.msra.mxu0 0.0
    %973 = vmatprep.subr.mxu0 0.0
    %974 = vmatpush1.msra.mxu0 0.0
    %975 = vmatprep.subr.mxu0 0.0
    %976 = vmatpush1.msra.mxu0 0.0
    %977 = vmatprep.subr.mxu0 0.0
    %978 = vmatpush1.msra.mxu0 0.0
    %979 = vmatprep.subr.mxu0 0.0
    %980 = vmatpush1.msra.mxu0 0.0
    %981 = vmatprep.subr.mxu0 0.0
    %982 = vmatpush1.msra.mxu0 0.0
    %983 = vmatprep.subr.mxu0 0.0
    %984 = vmatpush1.msra.mxu0 0.0
    %985 = vmatprep.subr.mxu0 0.0
    %986 = vmatpush1.msra.mxu0 0.0
    %987 = vmatprep.subr.mxu0 0.0
    %988 = vmatpush1.msra.mxu0 0.0
    %989 = vmatprep.subr.mxu0 0.0
    %990 = vmatpush1.msra.mxu0 0.0
    %991 = vmatprep.subr.mxu0 0.0
    %992 = vmatpush1.msra.mxu0 0.0
    %993 = vmatprep.subr.mxu0 0.0
    %994 = vmatpush1.msra.mxu0 0.0
    %995 = vmatprep.subr.mxu0 0.0
    %996 = vmatpush1.msra.mxu0 0.0
    %997 = vmatprep.subr.mxu0 0.0
    %998 = vmatpush1.msra.mxu0 0.0
    %999 = vmatprep.subr.mxu0 0.0
    %1000 = vmatpush1.msra.mxu0 0.0
    %1001 = vmatprep.subr.mxu0 0.0
    %1002 = vmatpush1.msra.mxu0 0.0
    %1003 = vmatprep.subr.mxu0 0.0
    %1004 = vmatpush1.msra.mxu0 0.0
    %1005 = vmatprep.subr.mxu0 0.0
    %1006 = vmatpush1.msra.mxu0 0.0
    %1007 = vmatprep.subr.mxu0 0.0
    %1008 = vmatpush1.msra.mxu0 0.0
    %1009 = vmatprep.subr.mxu0 0.0
    %1010 = vmatpush1.msra.mxu0 0.0
    %1011 = vmatprep.subr.mxu0 0.0
    %1012 = vmatpush1.msra.mxu0 0.0
    %1013 = vmatprep.subr.mxu0 0.0
    %1014 = vmatpush1.msra.mxu0 0.0
    %1015 = vmatprep.subr.mxu0 0.0
    %1016 = vmatpush1.msra.mxu0 0.0
    %1017 = vmatprep.subr.mxu0 0.0
    %1018 = vmatpush1.msra.mxu0 0.0
    %1019 = vmatprep.subr.mxu0 0.0
    %1020 = vmatpush1.msra.mxu0 0.0
    %1021 = vmatprep.subr.mxu0 0.0
    %1022 = vmatpush1.msra.mxu0 0.0
    %1023 = vmatprep.subr.mxu0 0.0
    %1024 = vmatpush1.msra.mxu0 0.0
    %1025 = vmatprep.mubr.f32.mxu0 0.0
    %v1026 = vand.u32 %v557, 4294901760
    %1027 = vmatmul.mubr.f32.gmra.mrb[0].mxu0 %v1026
    %v1028 = vpop.f32.mrb[0].mxu0
    %v1029 = vadd.f32 %v952, %v1028
    %v1030 = vpop.f32.mrb[0].mxu0
    %1031 = vmatprep.mubr.f32.mxu0 0.0
    %v1032 = vand.u32 %v560, 4294901760
    %1033 = vmatmul.mubr.f32.gmra.mrb[0].mxu0 %v1032
    %v1034 = vpop.f32.mrb[0].mxu0
    %v1035 = vadd.f32 %v958, %v1034
    %v1036 = vpop.f32.mrb[0].mxu0
    %1037 = vdwg.mxu0
    %v1038 = vrsqrt.pop %v539
    %v1039 = vmul.f32 %v539, %v1038
    %vm1040 = vcmp.eq.f32.partialorder %v539, inf
    %v1041 = vsel %vm1040, %v539, %v1039
    %vm1042 = vcmp.eq.f32.partialorder %v539, 0.0
    %v1043 = vand.u32 %v539, 2147483648
    %v1044 = vsel %vm1042, %v1043, %v1041
    %v1045 = vrsqrt.pop %v545
    %v1046 = vmul.f32 %v545, %v1045
    %vm1047 = vcmp.eq.f32.partialorder %v545, inf
    %v1048 = vsel %vm1047, %v545, %v1046
    %vm1049 = vcmp.eq.f32.partialorder %v545, 0.0
    %v1050 = vand.u32 %v545, 2147483648
    %v1051 = vsel %vm1049, %v1050, %v1048
    %v1052 = vrsqrt.pop %v1029
    %v1053 = vmul.f32 %v1029, %v1052
    %vm1054 = vcmp.eq.f32.partialorder %v1029, inf
    %v1055 = vsel %vm1054, %v1029, %v1053
    %vm1056 = vcmp.eq.f32.partialorder %v1029, 0.0
    %v1057 = vand.u32 %v1029, 2147483648
    %v1058 = vsel %vm1056, %v1057, %v1055
    %v1059 = vrsqrt.pop %v1035
    %v1060 = vmul.f32 %v1035, %v1059
    %vm1061 = vcmp.eq.f32.partialorder %v1035, inf
    %v1062 = vsel %vm1061, %v1035, %v1060
    %vm1063 = vcmp.eq.f32.partialorder %v1035, 0.0
    %v1064 = vand.u32 %v1035, 2147483648
    %v1065 = vsel %vm1063, %v1064, %v1062
    %v1066 = vsub.f32 %v1044, %v1058
    %v1067 = vsub.f32 %v1051, %v1065
    %v1068 = vadd.f32 %v1066, 1.0
    %v1069 = vadd.f32 %v1067, 1.0
    %v1070 = vmax.f32 %v1068, 0.0
    %v1071 = vmax.f32 %v1069, 0.0
    %s1072 = smul.u32 0, 16
    %v1073 = vlaneseq
    %v1074 = vshrl.u32 %v1073, 7
    %v1075 = vadd.s32 %v1074, 8
    %v1076 = vstv %s1072
    %v1077 = vadd.s32 %v1076, %v1074
    %v1078 = vadd.s32 %v1076, %v1075
    %vm1079 = vcmp.lt.s32.totalorder %v1077, 16
    %vm1080 = vcmp.lt.s32.totalorder %v1078, 16
    %v1081 = vsel %vm1079, %v1070, 0.0
    %v1082 = vsel %vm1080, %v1071, 0.0
    %vm1083 = vcmask 7168
    %v1084 = vsel %vm1083, %v1081, 0.0
    %v1085 = vsel %vm1083, %v1082, 0.0
    %v1086 = vadd.f32 %v1084, %v1085
    %v1087 = vrot.slane %v1086, 4
    %v1088 = vadd.f32 %v1086, %v1087
    %v1089 = vrot.slane %v1088, 2
    %v1090 = vadd.f32 %v1088, %v1089
    %v1091 = vrot.slane %v1090, 1
    %v1092 = vadd.f32 %v1090, %v1091
    %v1093 = vlaneseq
    %v1094 = vand.u32 %v1093, 127
    %vm1095 = vcmp.eq.s32.totalorder %v1074, 0
    %vm1096 = vcmp.eq.s32.totalorder %v1094, 0
    %vm1097 = vmand %vm1095, %vm1096
    %1099 = vset.pattern.permute.xlu0 0
    %1100 = vperm.xlu0 %1099, %v1092
    %v1101 = vpop.permute.xlu0 %1100
    %v1103 = vsel %vm1097, %v1101, 0.0
    %1104 = vst [vmem:[%s3] sm:$0xff] %v1103
    // Predicated region
    $region26: #{triplet_loss.1} parent=1 // pred_check
      _
    $region27: #{triplet_loss.1} parent=1 // pred_check_branch
      %1106 = sbr.rel (0) target = $region29
    $region28: #{triplet_loss.1} parent=1 // pred_region
      _
    $region29: #{triplet_loss.1} parent=1 // pred_fallthru
      _
    // Predicated region
    $region30: #{triplet_loss.1} parent=1 // pred_check
      _
    $region31: #{triplet_loss.1} parent=1 // pred_check_branch
      %1108 = sbr.rel (0) target = $region33
    $region32: #{triplet_loss.1} parent=1 // pred_region
      _
    $region33: #{triplet_loss.1} parent=1 // pred_fallthru
      _
    %1109 = vsyncpa [#allocation3], 1
    %1110 = vsyncpa [#allocation5], 1

</llo_original>
